<compile_context>
chip_gen: v5e
topology: v5e:2x2
jax: 0.10.0
libtpu: 0.0.40
codegen_flags: <defaults>
</compile_context>

<pallas_src>
import jax
import jax.numpy as jnp
from jax.experimental import pallas as pl
from jax.experimental.pallas import tpu as pltpu


def _round_up(x, m):
    return (x + m - 1) // m * m


def _choose_tile_b(batch, n_frames):
    """Pick a batch-tile size (multiple of 8) with ~1 MiB of f32 per class/buffer."""
    budget_bytes = 1 << 20
    tb = max(8, (budget_bytes // (max(n_frames, 1) * 4)) // 8 * 8)
    tb = min(tb, _round_up(batch, 8))
    return int(tb)


def _anticipation_loss_kernel(logits_ref, tgt_ref, pen_ref, out_ref):
    """logits_ref: (2, TB, N); tgt_ref: (TB, 1); pen_ref: (1, N); out_ref: (TB, 1)."""
    l0 = logits_ref[0].astype(jnp.float32)          # (TB, N) logit of class 0
    l1 = logits_ref[1].astype(jnp.float32)          # (TB, N) logit of class 1
    t = tgt_ref[...].astype(jnp.float32)            # (TB, 1) target in {0., 1.}
    pen1 = pen_ref[...]                             # (1, N)  positive-class penalty

    # 2-class log-softmax: lse = max(l0, l1) + log(1 + exp(-|l1 - l0|))
    # (1 exp + 1 log per element, numerically stable)
    d = jnp.abs(l1 - l0)
    lse = jnp.maximum(l0, l1) + jnp.log(1.0 + jnp.exp(-d))
    ls0 = l0 - lse                                   # log_softmax[..., 0]
    ls1 = l1 - lse                                   # log_softmax[..., 1]

    # one_hot(targets) selects which class's weighted log-softmax contributes;
    # negative-class penalty is 1.0, positive-class penalty is pen1.
    contrib = -((1.0 - t) * ls0 + t * pen1 * ls1)    # (TB, N)

    # per-batch-row partial sums (lane-axis reduce only); final scaling in wrapper
    out_ref[...] = jnp.sum(contrib, axis=-1, keepdims=True)


def anticipation_loss(logits, targets, *, frame_of_accident=90.0,
                      decay_coefficient=30.0, tile_b=None):
    """logits: (B, N, 2) float (f32 or bf16), targets: (B,) int in {0,1}. Scalar loss."""
    B, N, C = logits.shape
    assert C == 2, "AnticipationLoss expects 2 classes"

    # Class-major, frame-on-lanes layout: one contiguous DMA source for the kernel.
    logits_t = jnp.transpose(logits, (2, 0, 1))                 # (2, B, N)
    tgt = targets.astype(jnp.float32).reshape(B, 1)             # (B, 1)

    # Hoisted positive-class penalty (depends only on the frame index).
    frames = jnp.arange(N, dtype=jnp.float32)
    pen1 = jnp.exp(-jnp.maximum(float(frame_of_accident) - frames, 0.0)
                   / float(decay_coefficient)).reshape(1, N)    # (1, N)

    tb = _choose_tile_b(B, N) if tile_b is None else int(tile_b)
    b_pad = _round_up(B, tb)
    if b_pad != B:
        logits_t = jnp.pad(logits_t, ((0, 0), (0, b_pad - B), (0, 0)))
        tgt = jnp.pad(tgt, ((0, b_pad - B), (0, 0)))
    n_tiles = b_pad // tb

    row_sums = pl.pallas_call(
        _anticipation_loss_kernel,
        out_shape=jax.ShapeDtypeStruct((b_pad, 1), jnp.float32),
        grid=(n_tiles,),
        in_specs=[
            pl.BlockSpec((2, tb, N), lambda i: (0, i, 0)),      # logits (class-major)
            pl.BlockSpec((tb, 1), lambda i: (i, 0)),            # targets
            pl.BlockSpec((1, N), lambda i: (0, 0)),             # penalty (resident)
        ],
        out_specs=pl.BlockSpec((tb, 1), lambda i: (i, 0)),      # per-row partial sums
        compiler_params=pltpu.CompilerParams(
            dimension_semantics=("parallel",)),
    )(logits_t, tgt, pen1)

    # Drop padded rows, then the tiny final reduction + normalization in XLA.
    return jnp.sum(row_sums[:B, 0]) / (B * N)


def _reference_loss(logits, targets, frame_of_accident, decay_coefficient):
    """Pure-JAX port of the PyTorch forward, for verification."""
    B, N, C = logits.shape
    frames = jnp.arange(N, dtype=jnp.float32)
    pos_penalty = jnp.exp(-jnp.maximum(frame_of_accident - frames, 0.0)
                          / decay_coefficient)
    neg_penalty = jnp.ones((N,), dtype=jnp.float32)
    penalty = jnp.stack([neg_penalty, pos_penalty], axis=1)        # (N, 2)

    onehot = jax.nn.one_hot(targets, C)                            # (B, 2)
    onehot = jnp.broadcast_to(onehot[:, None, :], (B, N, C)).reshape(-1, C)
    logits2 = logits.reshape(-1, C)
    log_sm = jax.nn.log_softmax(logits2, axis=-1)
    pen = jnp.broadcast_to(penalty[None], (B, N, C)).reshape(-1, C)
    return jnp.sum(-log_sm * pen * onehot) / B / N


if __name__ == "__main__":
    key = jax.random.PRNGKey(0)

    # Case 1: small shape, single tile.
    B, N, C = 2, 16, 2
    foa, decay = 12.0, 4.0
    k_logits, k_tgt, key = jax.random.split(key, 3)
    logits = jax.random.normal(k_logits, (B, N, C), dtype=jnp.float32)
    targets = jax.random.randint(k_tgt, (B,), 0, 2, dtype=jnp.int32)

    loss = anticipation_loss(logits, targets, frame_of_accident=foa,
                             decay_coefficient=decay)
    loss = jax.block_until_ready(loss)
    ref = _reference_loss(logits, targets, foa, decay)
    assert jnp.allclose(loss, ref, atol=1e-5, rtol=1e-5), (loss, ref)

    # Case 2: module defaults (N=100), forced small tile -> multi-tile grid + padding.
    B2, N2 = 10, 100
    foa2, decay2 = 90.0, 30.0
    k_logits2, k_tgt2, key = jax.random.split(key, 3)
    logits2 = jax.random.normal(k_logits2, (B2, N2, C), dtype=jnp.float32)
    targets2 = jax.random.randint(k_tgt2, (B2,), 0, 2, dtype=jnp.int32)

    loss2 = anticipation_loss(logits2, targets2, frame_of_accident=foa2,
                              decay_coefficient=decay2, tile_b=8)
    loss2 = jax.block_until_ready(loss2)
    ref2 = _reference_loss(logits2, targets2, foa2, decay2)
    assert jnp.allclose(loss2, ref2, atol=1e-5, rtol=1e-5), (loss2, ref2)

    print("KERNEL_OK")
</pallas_src>

<mosaic_0001>
module attributes {stable_mosaic.version = 11 : i64} {
  func.func @_anticipation_loss_kernel(%arg0: i32, %arg1: memref<2x8x16xf32, #tpu.memory_space<vmem>>, %arg2: memref<8x1xf32, #tpu.memory_space<vmem>>, %arg3: memref<1x16xf32, #tpu.memory_space<vmem>>, %arg4: memref<8x1xf32, #tpu.memory_space<vmem>>) attributes {dimension_semantics = [#tpu.dimension_semantics<parallel>], iteration_bounds = array<i64: 1>, scalar_prefetch = 0 : i64, scratch_operands = 0 : i64, tpu.core_type = #tpu.core_type<tc>, window_params = [{transform_indices = @transform_0, window_bounds = array<i64: 2, 8, 16>}, {transform_indices = @transform_1, window_bounds = array<i64: 8, 1>}, {pipeline_mode = #tpu.pipeline_mode<synchronous>, transform_indices = @transform_2, window_bounds = array<i64: 1, 16>}, {transform_indices = @transform_3, window_bounds = array<i64: 8, 1>}]} {
    %c0 = arith.constant 0 : index
    %c0_0 = arith.constant 0 : index
    %c0_1 = arith.constant 0 : index
    %0 = vector.load %arg1[%c0, %c0_0, %c0_1] : memref<2x8x16xf32, #tpu.memory_space<vmem>>, vector<1x8x16xf32>
    %1 = vector.shape_cast %0 : vector<1x8x16xf32> to vector<8x16xf32>
    %c1 = arith.constant 1 : index
    %c0_2 = arith.constant 0 : index
    %c0_3 = arith.constant 0 : index
    %2 = vector.load %arg1[%c1, %c0_2, %c0_3] : memref<2x8x16xf32, #tpu.memory_space<vmem>>, vector<1x8x16xf32>
    %3 = vector.shape_cast %2 : vector<1x8x16xf32> to vector<8x16xf32>
    %c0_4 = arith.constant 0 : index
    %c0_5 = arith.constant 0 : index
    %4 = vector.load %arg2[%c0_4, %c0_5] : memref<8x1xf32, #tpu.memory_space<vmem>>, vector<8x1xf32>
    %c0_6 = arith.constant 0 : index
    %c0_7 = arith.constant 0 : index
    %5 = vector.load %arg3[%c0_6, %c0_7] : memref<1x16xf32, #tpu.memory_space<vmem>>, vector<1x16xf32>
    %6 = arith.subf %3, %1 : vector<8x16xf32>
    %7 = math.absf %6 : vector<8x16xf32>
    %8 = arith.maximumf %1, %3 : vector<8x16xf32>
    %cst = arith.constant 0.000000e+00 : f32
    %9 = vector.broadcast %cst : f32 to vector<8x16xf32>
    %10 = arith.subf %9, %7 : vector<8x16xf32>
    %11 = math.exp %10 : vector<8x16xf32>
    %cst_8 = arith.constant 1.000000e+00 : f32
    %12 = vector.broadcast %cst_8 : f32 to vector<8x16xf32>
    %13 = arith.addf %12, %11 : vector<8x16xf32>
    %14 = math.log %13 : vector<8x16xf32>
    %15 = arith.addf %8, %14 : vector<8x16xf32>
    %16 = arith.subf %1, %15 : vector<8x16xf32>
    %17 = arith.subf %3, %15 : vector<8x16xf32>
    %cst_9 = arith.constant 1.000000e+00 : f32
    %18 = vector.broadcast %cst_9 : f32 to vector<8x1xf32>
    %19 = arith.subf %18, %4 : vector<8x1xf32>
    %20 = vector.broadcast %19 : vector<8x1xf32> to vector<8x16xf32>
    %21 = arith.mulf %20, %16 : vector<8x16xf32>
    %22 = vector.broadcast %4 : vector<8x1xf32> to vector<8x16xf32>
    %23 = vector.broadcast %5 : vector<1x16xf32> to vector<8x16xf32>
    %24 = arith.mulf %22, %23 : vector<8x16xf32>
    %25 = arith.mulf %24, %17 : vector<8x16xf32>
    %26 = arith.addf %21, %25 : vector<8x16xf32>
    %cst_10 = arith.constant 0.000000e+00 : f32
    %27 = vector.broadcast %cst_10 : f32 to vector<8x16xf32>
    %28 = arith.subf %27, %26 : vector<8x16xf32>
    %cst_11 = arith.constant dense<0.000000e+00> : vector<8xf32>
    %29 = vector.multi_reduction <add>, %28, %cst_11 [1] : vector<8x16xf32> to vector<8xf32>
    %30 = vector.shape_cast %29 : vector<8xf32> to vector<8x1xf32>
    %c0_12 = arith.constant 0 : index
    %c0_13 = arith.constant 0 : index
    %31 = vector.load %arg4[%c0_12, %c0_13] : memref<8x1xf32, #tpu.memory_space<vmem>>, vector<8x1xf32>
    tpu.vector_store %arg4[%c0_12, %c0_13], %30 {strides = array<i32>} : memref<8x1xf32, #tpu.memory_space<vmem>>, vector<8x1xf32>,
    return
  }
  func.func @transform_0(%arg0: i32) -> (i32, i32, i32) {
    %c0_i32 = arith.constant 0 : i32
    %c0_i32_0 = arith.constant 0 : i32
    %c0_i32_1 = arith.constant 0 : i32
    return %c0_i32, %arg0, %c0_i32_0 : i32, i32, i32
  }
  func.func @transform_1(%arg0: i32) -> (i32, i32) {
    %c0_i32 = arith.constant 0 : i32
    %c0_i32_0 = arith.constant 0 : i32
    return %arg0, %c0_i32 : i32, i32
  }
  func.func @transform_2(%arg0: i32) -> (i32, i32) {
    %c0_i32 = arith.constant 0 : i32
    %c0_i32_0 = arith.constant 0 : i32
    %c0_i32_1 = arith.constant 0 : i32
    return %c0_i32, %c0_i32_0 : i32, i32
  }
  func.func @transform_3(%arg0: i32) -> (i32, i32) {
    %c0_i32 = arith.constant 0 : i32
    %c0_i32_0 = arith.constant 0 : i32
    return %arg0, %c0_i32 : i32, i32
  }
}

</mosaic_0001>

<llo_original>
// kernel: tpu_custom_call.1
$region0: #{tpu_custom_call.1}
  #allocation0 [shape = 'u32[]', space=smem, size = 0x4, offset = 0x4, fixed_abs, tag = 'smem constant byte address 0x4 - core index']
  #allocation1 [shape = 'u32[72,128]{1,0:T(1,128)}', space=vmem, size = 0x9000, scoped, tag = 'internal scratch']
  %s0 = inlined_call_operand.hbm [shape: f32[2,8,16], index: 0, kind: input, shape index: {}]
  %s1 = inlined_call_operand.vmem [shape: f32[8,1], index: 1, kind: input, shape index: {}]
  %s2 = inlined_call_operand.vmem [shape: f32[1,16], index: 2, kind: input, shape index: {}]
  %s3 = inlined_call_operand.vmem [shape: f32[8,1], index: 3, kind: output, shape index: {}]
  %s4 = sld [smem:[#allocation0]]
  $region26: #{tpu_custom_call.1} parent=0
    _
  %s6 = ssub.s32 1, %s4
  %s7 = scalar_select 0, %s6, %s4
  $region1: #{tpu_custom_call.1} parent=0
    #allocation2 [shape = 'u8[8192]{0}', space=vmem, size = 0x2000, scoped, tag = 'input window, operand 0, single buffered']
    #allocation3 [shape = 's32[1]{0}', space=sflag, size = 0x4, scoped, tag = 'scoped memory for tpu_custom_call.1']
    %8 = vsyncpa [#allocation3], 0
    // Predicated region
    $region2: #{tpu_custom_call.1} parent=1 // pred_check
      _
    $region3: #{tpu_custom_call.1} parent=1 // pred_check_branch
      %10 = sbr.rel (0) target = $region5
    $region4: #{tpu_custom_call.1} parent=1 // pred_region
      %12 = vsyncadd [#allocation3], 0
      %s13 = sshll.u32 %s0, 4
      %s14 = int_to_ptr.hbm [resolvable:$true] %s13
      %s15 = sshll.u32 [#allocation2], 4
      %s16 = int_to_ptr.vmem [resolvable:$true] %s15
      %21 = dma.hbm_to_vmem [thread:$0]  %s14, 256, %s16, [#allocation3], 128, 128, 8
    $region5: #{tpu_custom_call.1} parent=1 // pred_fallthru
      _
    // Predicated region
    $region6: #{tpu_custom_call.1} parent=1 // pred_check
      _
    $region7: #{tpu_custom_call.1} parent=1 // pred_check_branch
      %23 = sbr.rel (0) target = $region9
    $region8: #{tpu_custom_call.1} parent=1 // pred_region
      _
    $region9: #{tpu_custom_call.1} parent=1 // pred_fallthru
      _
    // Predicated region
    $region10: #{tpu_custom_call.1} parent=1 // pred_check
      _
    $region11: #{tpu_custom_call.1} parent=1 // pred_check_branch
      %25 = sbr.rel (0) target = $region13
    $region12: #{tpu_custom_call.1} parent=1 // pred_region
      _
    $region13: #{tpu_custom_call.1} parent=1 // pred_fallthru
      _
    // Predicated region
    $region14: #{tpu_custom_call.1} parent=1 // pred_check
      _
    $region15: #{tpu_custom_call.1} parent=1 // pred_check_branch
      %27 = sbr.rel (0) target = $region17
    $region16: #{tpu_custom_call.1} parent=1 // pred_region
      %29 = dma.done [#allocation3], 256
    $region17: #{tpu_custom_call.1} parent=1 // pred_fallthru
      _
    %v30 = vld [vmem:[#allocation2] sm:$0xff]
    %s31 = scalar_lea.vmem [#allocation2], 8
    %v32 = vld [vmem:[%s31] sm:$0xff]
    %v33 = vld [vmem:[%s1] sm:$0xff]
    %v34 = vld [vmem:[%s2] sm:$0x1]
    %v35 = vsub.f32 %v32, %v30
    %v36 = vand.u32 2147483647, %v35
    %v37 = vmax.f32 %v30, %v32
    %v38 = vsub.f32 0.0, %v36
    %v39 = vmul.f32 %v38, 1.442695
    %v40 = vpow.pop %v39
    %v41 = vadd.f32 %v40, 1.0
    %v42 = vlog2.pop %v41
    %v43 = vmul.f32 %v42, 0.6931472
    %v44 = vadd.f32 %v37, %v43
    %v45 = vsub.f32 %v30, %v44
    %v46 = vsub.f32 %v32, %v44
    %v47 = vsub.f32 1.0, %v33
    %49 = vset.pattern.permute.xlu0 0
    %50 = vperm.xlu0 %49, %v47
    %v51 = vpop.permute.xlu0 %50
    %v53 = vmul.f32 %v51, %v45
    %55 = vset.pattern.permute.xlu0 0
    %56 = vperm.xlu0 %55, %v33
    %v57 = vpop.permute.xlu0 %56
    %v60 = vperm.slane %v34, 0
    %v62 = vmul.f32 %v57, %v60
    %v63 = vmul.f32 %v62, %v46
    %v64 = vadd.f32 %v53, %v63
    %v65 = vsub.f32 0.0, %v64
    %vm66 = vcmask 130048
    %v67 = vsel %vm66, %v65, 0.0
    %68 = vadd.xlane.f32.xlu0 %v67
    %v69 = vpop.xlane.xlu0 %68
    %vm70 = vcmask 7168
    %71 = vst.msk [vmem:[%s3] sm:$0xff] %vm70, %v69
    // Predicated region
    $region18: #{tpu_custom_call.1} parent=1 // pred_check
      _
    $region19: #{tpu_custom_call.1} parent=1 // pred_check_branch
      %73 = sbr.rel (0) target = $region21
    $region20: #{tpu_custom_call.1} parent=1 // pred_region
      _
    $region21: #{tpu_custom_call.1} parent=1 // pred_fallthru
      _
    // Predicated region
    $region22: #{tpu_custom_call.1} parent=1 // pred_check
      _
    $region23: #{tpu_custom_call.1} parent=1 // pred_check_branch
      %75 = sbr.rel (0) target = $region25
    $region24: #{tpu_custom_call.1} parent=1 // pred_region
      _
    $region25: #{tpu_custom_call.1} parent=1 // pred_fallthru
      _
    %76 = vsyncpa [#allocation3], 1

</llo_original>
